<compile_context>
chip_gen: v7x
topology: tpu7x:2x2x1
jax: 0.10.0
libtpu: 0.0.40
codegen_flags: <defaults>
</compile_context>

<pallas_src>
import jax
import jax.numpy as jnp
from jax.experimental import pallas as pl
from jax.experimental.pallas import tpu as pltpu


def _or_kernel(a_ref, b_ref, o_ref):
    # logical_or(logical_or(a, b), logical_or(a, b)) == logical_or(a, b):
    # one VPU op per tile, inputs/outputs stay bool end-to-end.
    o_ref[...] = jnp.logical_or(a_ref[...], b_ref[...])


def _round_up(x, m):
    return ((x + m - 1) // m) * m


def simple_or_module(a, b):
    """Pallas equivalent of SimpleOrModule.forward. Returns a bool array."""
    assert a.shape == b.shape, "elementwise op requires matching shapes"
    orig_shape = a.shape

    # torch.logical_or treats any nonzero as True; for bool inputs (the
    # expected case) these are no-ops and add no extra HBM pass.
    if a.dtype != jnp.bool_:
        a = a != 0
    if b.dtype != jnp.bool_:
        b = b != 0

    n = int(a.size)

    # Dispatch + reshape overhead beats the OR itself at this size.
    if n < 128:
        c = jnp.logical_or(a, b)
        return jnp.logical_or(c, c)

    # Lane-dense 2D slab; prefer a lane width that divides n exactly so the
    # flatten/reshape is a free view (no pad, no extra HBM round-trip).
    a_flat = a.reshape(-1)
    b_flat = b.reshape(-1)
    cols = None
    for c_try in (1024, 512, 256, 128):
        if n % c_try == 0:
            cols = c_try
            break
    padded = False
    if cols is None:
        # Rare ragged case: minimal pad to a multiple of 128 lanes
        # (False-padding is OR-safe; tail is sliced off below).
        cols = 128
        n_pad = _round_up(n, cols)
        a_flat = jnp.pad(a_flat, (0, n_pad - n))
        b_flat = jnp.pad(b_flat, (0, n_pad - n))
        padded = True
    rows = a_flat.shape[0] // cols
    a2 = a_flat.reshape(rows, cols)
    b2 = b_flat.reshape(rows, cols)

    # Row tile: ~4 MiB per buffer (3 arrays x 2 double-buffers = 24 MiB,
    # under the 32 MiB scoped-VMEM default and v7x's 64 MiB physical VMEM),
    # capped at ceil(rows/2) so non-tiny inputs always get >= 2 grid steps
    # for v7x's two TensorCores (no-op on single-TC v5e/v6e).
    tm_cap = max(32, (4 << 20) // cols)
    tm_half = _round_up(pl.cdiv(rows, 2), 32)
    tm = min(tm_cap, tm_half)
    if tm >= rows:
        tm = rows  # single full-extent block for small row counts

    grid = (pl.cdiv(rows, tm),)
    out2 = pl.pallas_call(
        _or_kernel,
        out_shape=jax.ShapeDtypeStruct((rows, cols), jnp.bool_),
        grid=grid,
        in_specs=[
            pl.BlockSpec((tm, cols), lambda i: (i, 0)),
            pl.BlockSpec((tm, cols), lambda i: (i, 0)),
        ],
        out_specs=pl.BlockSpec((tm, cols), lambda i: (i, 0)),
        compiler_params=pltpu.CompilerParams(
            dimension_semantics=("parallel",)),
    )(a2, b2)

    if padded:
        return out2.reshape(-1)[:n].reshape(orig_shape)
    return out2.reshape(orig_shape)


if __name__ == "__main__":
    key = jax.random.PRNGKey(0)
    ka, kb = jax.random.split(key)

    shape = (2, 4, 16, 16)  # NCHW-style, matches the small PyTorch test input
    a = jax.random.bernoulli(ka, p=0.5, shape=shape)
    b = jax.random.bernoulli(kb, p=0.5, shape=shape)

    out = simple_or_module(a, b)
    out = jax.block_until_ready(out)

    # Reference check in plain JAX.
    c = jnp.logical_or(a, b)
    ref = jnp.logical_or(c, c)
    assert out.shape == ref.shape
    assert out.dtype == jnp.bool_
    assert bool(jnp.array_equal(out, ref))

    print("KERNEL_OK")
</pallas_src>

<mosaic_0001>
module attributes {stable_mosaic.version = 11 : i64} {
  func.func @_or_kernel(%arg0: i32, %arg1: memref<2x1024xi32, #tpu.memory_space<vmem>>, %arg2: memref<2x1024xi32, #tpu.memory_space<vmem>>, %arg3: memref<2x1024xi32, #tpu.memory_space<vmem>>) attributes {dimension_semantics = [#tpu.dimension_semantics<parallel>], iteration_bounds = array<i64: 1>, scalar_prefetch = 0 : i64, scratch_operands = 0 : i64, tpu.core_type = #tpu.core_type<tc>, window_params = [{transform_indices = @transform_0, window_bounds = array<i64: 2, 1024>}, {transform_indices = @transform_1, window_bounds = array<i64: 2, 1024>}, {transform_indices = @transform_2, window_bounds = array<i64: 2, 1024>}]} {
    %c0 = arith.constant 0 : index
    %c0_0 = arith.constant 0 : index
    %0 = vector.load %arg1[%c0, %c0_0] : memref<2x1024xi32, #tpu.memory_space<vmem>>, vector<2x1024xi32>
    %cst = arith.constant dense<0> : vector<2x1024xi32>
    %1 = arith.cmpi ne, %0, %cst : vector<2x1024xi32>
    %c0_1 = arith.constant 0 : index
    %c0_2 = arith.constant 0 : index
    %2 = vector.load %arg2[%c0_1, %c0_2] : memref<2x1024xi32, #tpu.memory_space<vmem>>, vector<2x1024xi32>
    %cst_3 = arith.constant dense<0> : vector<2x1024xi32>
    %3 = arith.cmpi ne, %2, %cst_3 : vector<2x1024xi32>
    %4 = arith.ori %1, %3 : vector<2x1024xi1>
    %c0_4 = arith.constant 0 : index
    %c0_5 = arith.constant 0 : index
    %5 = vector.load %arg3[%c0_4, %c0_5] : memref<2x1024xi32, #tpu.memory_space<vmem>>, vector<2x1024xi32>
    %6 = arith.extui %4 : vector<2x1024xi1> to vector<2x1024xi32>
    %cst_6 = arith.constant dense<0> : vector<2x1024xi32>
    %7 = arith.cmpi ne, %5, %cst_6 : vector<2x1024xi32>
    tpu.vector_store %arg3[%c0_4, %c0_5], %6 {strides = array<i32>} : memref<2x1024xi32, #tpu.memory_space<vmem>>, vector<2x1024xi32>,
    return
  }
  func.func @transform_0(%arg0: i32) -> (i32, i32) {
    %c0_i32 = arith.constant 0 : i32
    %c0_i32_0 = arith.constant 0 : i32
    return %arg0, %c0_i32 : i32, i32
  }
  func.func @transform_1(%arg0: i32) -> (i32, i32) {
    %c0_i32 = arith.constant 0 : i32
    %c0_i32_0 = arith.constant 0 : i32
    return %arg0, %c0_i32 : i32, i32
  }
  func.func @transform_2(%arg0: i32) -> (i32, i32) {
    %c0_i32 = arith.constant 0 : i32
    %c0_i32_0 = arith.constant 0 : i32
    return %arg0, %c0_i32 : i32, i32
  }
}

</mosaic_0001>

<llo_original>
// kernel: tpu_custom_call.1
$region0: #{tpu_custom_call.1}
  #allocation0 [shape = 'u32[]', space=smem, size = 0x4, offset = 0x4, fixed_abs, tag = 'smem constant byte address 0x4 - core index']
  #allocation1 [shape = 'u32[144,128]{1,0:T(1,128)}', space=vmem, size = 0x12000, scoped, tag = 'internal scratch']
  %s0 = inlined_call_operand.vmem [shape: s32[2,1024], index: 0, kind: input, shape index: {}]
  %s1 = inlined_call_operand.vmem [shape: s32[2,1024], index: 1, kind: input, shape index: {}]
  %s2 = inlined_call_operand.vmem [shape: s32[2,1024], index: 2, kind: output, shape index: {}]
  %s3 = sld [smem:[#allocation0]]
  $region18: #{tpu_custom_call.1} parent=0
    _
  %s5 = ssub.s32 1, %s3
  %s6 = scalar_select 0, %s5, %s3
  // Predicated region
  $region2: #{tpu_custom_call.1} parent=0 // pred_check
    _
  $region3: #{tpu_custom_call.1} parent=0 // pred_check_branch
    %8 = sbr.rel (0) target = $region5
  $region4: #{tpu_custom_call.1} parent=0 // pred_region
    _
  $region5: #{tpu_custom_call.1} parent=0 // pred_fallthru
    _
  // Predicated region
  $region6: #{tpu_custom_call.1} parent=0 // pred_check
    _
  $region7: #{tpu_custom_call.1} parent=0 // pred_check_branch
    %10 = sbr.rel (0) target = $region9
  $region8: #{tpu_custom_call.1} parent=0 // pred_region
    _
  $region9: #{tpu_custom_call.1} parent=0 // pred_fallthru
    _
  %v11 = vld [vmem:[%s0] sm:$0xff]
  %v12 = vld [vmem:[%s0 + $0x8] sm:$0xff]
  %vm13 = vcmp.ne.s32.totalorder %v11, 0
  %vm14 = vcmp.ne.s32.totalorder %v12, 0
  %v15 = vld [vmem:[%s1] sm:$0xff]
  %v16 = vld [vmem:[%s1 + $0x8] sm:$0xff]
  %vm17 = vcmp.ne.s32.totalorder %v15, 0
  %vm18 = vcmp.ne.s32.totalorder %v16, 0
  %vm19 = vmor %vm13, %vm17
  %vm20 = vmor %vm14, %vm18
  %v21 = vsel %vm19, 1, 0
  %v22 = vsel %vm20, 1, 0
  %23 = vst [vmem:[%s2] sm:$0xff] %v21
  %24 = vst [vmem:[%s2 + $0x8] sm:$0xff] %v22
  // Predicated region
  $region10: #{tpu_custom_call.1} parent=0 // pred_check
    _
  $region11: #{tpu_custom_call.1} parent=0 // pred_check_branch
    %26 = sbr.rel (0) target = $region13
  $region12: #{tpu_custom_call.1} parent=0 // pred_region
    _
  $region13: #{tpu_custom_call.1} parent=0 // pred_fallthru
    _
  // Predicated region
  $region14: #{tpu_custom_call.1} parent=0 // pred_check
    _
  $region15: #{tpu_custom_call.1} parent=0 // pred_check_branch
    %28 = sbr.rel (0) target = $region17
  $region16: #{tpu_custom_call.1} parent=0 // pred_region
    _
  $region17: #{tpu_custom_call.1} parent=0 // pred_fallthru
    _

</llo_original>
